<compile_context>
chip_gen: v7x
topology: tpu7x:2x2x1
jax: 0.10.0
libtpu: 0.0.40
codegen_flags: <defaults>
</compile_context>

<pallas_src>
import math

import jax
import jax.numpy as jnp
from jax.experimental import pallas as pl
from jax.experimental.pallas import tpu as pltpu

EPS = 1e-24
LOG_EPS = math.log(EPS)  # ~ -55.262


def _ce_kernel(logits_ref, labels_ref, mask_ref, out_ref, num_acc, den_acc):
    # grid = (n_splits, tiles_per_split); axis 0 "parallel", axis 1 "arbitrary"
    j = pl.program_id(1)

    @pl.when(j == 0)
    def _():
        num_acc[...] = jnp.zeros_like(num_acc)
        den_acc[...] = jnp.zeros_like(den_acc)

    x = logits_ref[...].astype(jnp.float32)                      # (TILE_N, C)
    c = x.shape[-1]

    # log-sum-exp pieces (numerically stable, per row)
    row_max = jnp.max(x, axis=-1, keepdims=True)                 # (TILE_N, 1)
    ex = jnp.exp(x - row_max)                                    # only full-tile EUP op
    denom = jnp.sum(ex, axis=-1, keepdims=True)                  # (TILE_N, 1)

    # gather logit at clamp(label) without materializing a full one-hot array
    labels = jnp.clip(labels_ref[...], 0, c - 1)                 # (TILE_N, 1) int32
    col_ids = jax.lax.broadcasted_iota(jnp.int32, x.shape, 1)    # (TILE_N, C)
    x_label = jnp.sum(jnp.where(col_ids == labels, x, 0.0),
                      axis=-1, keepdims=True)                    # (TILE_N, 1)

    # loss_row = -log(softmax[label] + EPS)
    #          = -max(log softmax[label], log EPS)   (matches torch's eps floor)
    logp = x_label - row_max - jnp.log(denom)                    # per-row log only
    logp = jnp.maximum(logp, jnp.float32(LOG_EPS))
    loss_row = -logp                                             # (TILE_N, 1)

    mask = mask_ref[...].astype(jnp.float32)                     # (TILE_N, 1)
    num_acc[...] += loss_row * mask
    den_acc[...] += mask

    @pl.when(j == pl.num_programs(1) - 1)
    def _():
        out_ref[0, 0] = jnp.sum(num_acc[...])
        out_ref[0, 1] = jnp.sum(den_acc[...])


def _choose_tile_n(n, c, itemsize):
    """Largest row tile that keeps the (double-buffered) logits block well
    inside the scoped-VMEM budget on all generations (v7x: 64 MiB physical)."""
    sub = 16 if itemsize == 2 else 8          # sublane packing for bf16 / f32
    budget = 8 * 1024 * 1024                  # bytes per logits buffer
    tile = budget // max(1, c * itemsize)
    tile = max(sub, min(1024, (tile // sub) * sub))
    n_rounded = -(-n // sub) * sub
    return min(tile, n_rounded)


def cross_entropy_loss(logits, labels, input_mask, *, tile_n=None, n_splits=None):
    """logits: (N, C) float, labels: (N,) int, input_mask: (N,) float -> scalar."""
    n, c = logits.shape
    itemsize = jnp.dtype(logits.dtype).itemsize
    sub = 16 if itemsize == 2 else 8
    if tile_n is None:
        tile_n = _choose_tile_n(n, c, itemsize)
    assert tile_n % sub == 0, "tile_n must be a multiple of the sublane pack"

    tiles_total = -(-n // tile_n)
    if n_splits is None:
        # two row-splits feed the two TensorCores on v7x; harmless elsewhere
        n_splits = 2 if tiles_total >= 2 else 1
    tiles_per_split = -(-tiles_total // n_splits)
    n_padded = n_splits * tiles_per_split * tile_n

    labels2d = labels.reshape(n, 1).astype(jnp.int32)
    mask2d = input_mask.reshape(n, 1).astype(jnp.float32)
    if n_padded != n:
        pad = n_padded - n
        # padded rows get mask = 0 -> contribute nothing to numerator/denominator
        logits = jnp.pad(logits, ((0, pad), (0, 0)))
        labels2d = jnp.pad(labels2d, ((0, pad), (0, 0)))
        mask2d = jnp.pad(mask2d, ((0, pad), (0, 0)))

    idx = lambda o, j: (o * tiles_per_split + j, 0)

    # TODO(synk): for very large vocabularies (C >= ~32k on v7x) add a second
    # grid axis over C with an online-softmax accumulation to bound the block.
    partials = pl.pallas_call(
        _ce_kernel,
        out_shape=jax.ShapeDtypeStruct((n_splits, 2), jnp.float32),
        grid_spec=pltpu.PrefetchScalarGridSpec(
            num_scalar_prefetch=0,
            grid=(n_splits, tiles_per_split),
            in_specs=[
                pl.BlockSpec((tile_n, c), idx),
                pl.BlockSpec((tile_n, 1), idx),
                pl.BlockSpec((tile_n, 1), idx),
            ],
            out_specs=pl.BlockSpec(
                (1, 2), lambda o, j: (o, 0), memory_space=pltpu.MemorySpace.SMEM
            ),
            scratch_shapes=[
                pltpu.VMEM((tile_n, 1), jnp.float32),  # sum(loss_row * mask)
                pltpu.VMEM((tile_n, 1), jnp.float32),  # sum(mask)
            ],
        ),
        compiler_params=pltpu.CompilerParams(
            dimension_semantics=("parallel", "arbitrary"),
            vmem_limit_bytes=64 * 1024 * 1024,
        ),
    )(logits, labels2d, mask2d)

    # final masked mean (same div-by-zero behavior as the reference)
    return jnp.sum(partials[:, 0]) / jnp.sum(partials[:, 1])


def _reference(logits, labels, input_mask):
    """Pure-JAX reference mirroring the PyTorch module exactly."""
    x = logits.astype(jnp.float32)
    c = x.shape[-1]
    row_max = jnp.max(x, axis=-1, keepdims=True)
    ex = jnp.exp(x - row_max)
    softmax = ex / jnp.sum(ex, axis=-1, keepdims=True)
    labels = jnp.clip(labels, 0, c - 1)
    one_hot = jax.nn.one_hot(labels, c, dtype=jnp.float32)
    loss_row = -jnp.sum(jnp.log(softmax + EPS) * one_hot, axis=-1)
    m = input_mask.reshape(-1).astype(jnp.float32)
    return jnp.sum(loss_row * m) / jnp.sum(m)


if __name__ == "__main__":
    key = jax.random.PRNGKey(0)
    k1, k2, k3 = jax.random.split(key, 3)

    batch, seq, num_classes = 2, 8, 32
    n = batch * seq

    logits = jax.random.normal(k1, (n, num_classes), dtype=jnp.float32) * 2.0
    # include some out-of-range labels to exercise the clamp path
    labels = jax.random.randint(k2, (n,), minval=-2, maxval=num_classes + 4,
                                dtype=jnp.int32)
    input_mask = (jax.random.uniform(k3, (n,)) > 0.25).astype(jnp.float32)

    # 1) default (auto) tile: single tile, single split
    loss = cross_entropy_loss(logits, labels, input_mask)
    loss = jax.block_until_ready(loss)
    ref = _reference(logits, labels, input_mask)
    assert jnp.allclose(loss, ref, rtol=1e-5, atol=1e-5), (loss, ref)

    # 2) forced small tile: exercises multi-tile accumulation + 2-way split
    loss2 = cross_entropy_loss(logits, labels, input_mask, tile_n=8)
    loss2 = jax.block_until_ready(loss2)
    assert jnp.allclose(loss2, ref, rtol=1e-5, atol=1e-5), (loss2, ref)

    # 3) non-multiple-of-tile N: exercises the zero-mask padding path
    n3 = 14
    loss3 = cross_entropy_loss(logits[:n3], labels[:n3], input_mask[:n3], tile_n=8)
    loss3 = jax.block_until_ready(loss3)
    ref3 = _reference(logits[:n3], labels[:n3], input_mask[:n3])
    assert jnp.allclose(loss3, ref3, rtol=1e-5, atol=1e-5), (loss3, ref3)

    # 4) bf16 logits: exercises the sublane-16 tile path and in-kernel f32 cast
    logits_bf16 = logits.astype(jnp.bfloat16)
    loss4 = cross_entropy_loss(logits_bf16, labels, input_mask)
    loss4 = jax.block_until_ready(loss4)
    ref4 = _reference(logits_bf16, labels, input_mask)
    assert jnp.allclose(loss4, ref4, rtol=1e-5, atol=1e-5), (loss4, ref4)

    print("KERNEL_OK")
</pallas_src>

<mosaic_0001>
module attributes {stable_mosaic.version = 11 : i64} {
  func.func @_ce_kernel(%arg0: i32, %arg1: i32, %arg2: memref<16x32xf32, #tpu.memory_space<vmem>>, %arg3: memref<16x1xi32, #tpu.memory_space<vmem>>, %arg4: memref<16x1xf32, #tpu.memory_space<vmem>>, %arg5: memref<1x2xf32, #tpu.memory_space<smem>>, %arg6: memref<16x1xf32, #tpu.memory_space<vmem>>, %arg7: memref<16x1xf32, #tpu.memory_space<vmem>>) attributes {dimension_semantics = [#tpu.dimension_semantics<parallel>, #tpu.dimension_semantics<arbitrary>], iteration_bounds = array<i64: 1, 1>, scalar_prefetch = 0 : i64, scratch_operands = 2 : i64, tpu.core_type = #tpu.core_type<tc>, window_params = [{transform_indices = @transform_0, window_bounds = array<i64: 16, 32>}, {transform_indices = @transform_1, window_bounds = array<i64: 16, 1>}, {transform_indices = @transform_2, window_bounds = array<i64: 16, 1>}, {transform_indices = @transform_3, window_bounds = array<i64: 1, 2>}]} {
    %c0_i32 = arith.constant 0 : i32
    %0 = arith.cmpi eq, %arg1, %c0_i32 : i32
    %1 = arith.extui %0 : i1 to i32
    %c0_i32_0 = arith.constant 0 : i32
    %2 = arith.cmpi ne, %1, %c0_i32_0 : i32
    scf.if %2 {
      %cst_22 = arith.constant 0.000000e+00 : f32
      %41 = vector.broadcast %cst_22 : f32 to vector<16x1xf32>
      %c0_23 = arith.constant 0 : index
      %c0_24 = arith.constant 0 : index
      %42 = vector.load %arg6[%c0_23, %c0_24] : memref<16x1xf32, #tpu.memory_space<vmem>>, vector<16x1xf32>
      tpu.vector_store %arg6[%c0_23, %c0_24], %41 {strides = array<i32>} : memref<16x1xf32, #tpu.memory_space<vmem>>, vector<16x1xf32>,
      %cst_25 = arith.constant 0.000000e+00 : f32
      %43 = vector.broadcast %cst_25 : f32 to vector<16x1xf32>
      %c0_26 = arith.constant 0 : index
      %c0_27 = arith.constant 0 : index
      %44 = vector.load %arg7[%c0_26, %c0_27] : memref<16x1xf32, #tpu.memory_space<vmem>>, vector<16x1xf32>
      tpu.vector_store %arg7[%c0_26, %c0_27], %43 {strides = array<i32>} : memref<16x1xf32, #tpu.memory_space<vmem>>, vector<16x1xf32>,
    } else {
    }
    %c0 = arith.constant 0 : index
    %c0_1 = arith.constant 0 : index
    %3 = vector.load %arg2[%c0, %c0_1] : memref<16x32xf32, #tpu.memory_space<vmem>>, vector<16x32xf32>
    %cst = arith.constant dense<0xFF800000> : vector<16xf32>
    %4 = vector.multi_reduction <maximumf>, %3, %cst [1] : vector<16x32xf32> to vector<16xf32>
    %5 = vector.shape_cast %4 : vector<16xf32> to vector<16x1xf32>
    %6 = vector.broadcast %5 : vector<16x1xf32> to vector<16x32xf32>
    %7 = arith.subf %3, %6 : vector<16x32xf32>
    %8 = math.exp %7 : vector<16x32xf32>
    %cst_2 = arith.constant dense<0.000000e+00> : vector<16xf32>
    %9 = vector.multi_reduction <add>, %8, %cst_2 [1] : vector<16x32xf32> to vector<16xf32>
    %10 = vector.shape_cast %9 : vector<16xf32> to vector<16x1xf32>
    %c0_3 = arith.constant 0 : index
    %c0_4 = arith.constant 0 : index
    %11 = vector.load %arg3[%c0_3, %c0_4] : memref<16x1xi32, #tpu.memory_space<vmem>>, vector<16x1xi32>
    %c0_i32_5 = arith.constant 0 : i32
    %c31_i32 = arith.constant 31 : i32
    %12 = vector.broadcast %c0_i32_5 : i32 to vector<16x1xi32>
    %13 = arith.maxsi %12, %11 : vector<16x1xi32>
    %14 = vector.broadcast %c31_i32 : i32 to vector<16x1xi32>
    %15 = arith.minsi %14, %13 : vector<16x1xi32>
    %16 = tpu.iota {dimensions = array<i32: 1>} : vector<16x32xi32>
    %17 = vector.broadcast %15 : vector<16x1xi32> to vector<16x32xi32>
    %18 = arith.cmpi eq, %16, %17 : vector<16x32xi32>
    %cst_6 = arith.constant 0.000000e+00 : f32
    %19 = vector.broadcast %cst_6 : f32 to vector<16x32xf32>
    %20 = arith.select %18, %3, %19 : vector<16x32xi1>, vector<16x32xf32>
    %cst_7 = arith.constant dense<0.000000e+00> : vector<16xf32>
    %21 = vector.multi_reduction <add>, %20, %cst_7 [1] : vector<16x32xf32> to vector<16xf32>
    %22 = vector.shape_cast %21 : vector<16xf32> to vector<16x1xf32>
    %23 = arith.subf %22, %5 : vector<16x1xf32>
    %24 = math.log %10 : vector<16x1xf32>
    %25 = arith.subf %23, %24 : vector<16x1xf32>
    %cst_8 = arith.constant -55.262043 : f32
    %26 = vector.broadcast %cst_8 : f32 to vector<16x1xf32>
    %27 = arith.maximumf %25, %26 : vector<16x1xf32>
    %cst_9 = arith.constant 0.000000e+00 : f32
    %28 = vector.broadcast %cst_9 : f32 to vector<16x1xf32>
    %29 = arith.subf %28, %27 : vector<16x1xf32>
    %c0_10 = arith.constant 0 : index
    %c0_11 = arith.constant 0 : index
    %30 = vector.load %arg4[%c0_10, %c0_11] : memref<16x1xf32, #tpu.memory_space<vmem>>, vector<16x1xf32>
    %c0_12 = arith.constant 0 : index
    %c0_13 = arith.constant 0 : index
    %31 = vector.load %arg6[%c0_12, %c0_13] : memref<16x1xf32, #tpu.memory_space<vmem>>, vector<16x1xf32>
    %32 = arith.mulf %29, %30 : vector<16x1xf32>
    %33 = arith.addf %31, %32 : vector<16x1xf32>
    %c0_14 = arith.constant 0 : index
    %c0_15 = arith.constant 0 : index
    %34 = vector.load %arg6[%c0_14, %c0_15] : memref<16x1xf32, #tpu.memory_space<vmem>>, vector<16x1xf32>
    tpu.vector_store %arg6[%c0_14, %c0_15], %33 {strides = array<i32>} : memref<16x1xf32, #tpu.memory_space<vmem>>, vector<16x1xf32>,
    %c0_16 = arith.constant 0 : index
    %c0_17 = arith.constant 0 : index
    %35 = vector.load %arg7[%c0_16, %c0_17] : memref<16x1xf32, #tpu.memory_space<vmem>>, vector<16x1xf32>
    %36 = arith.addf %35, %30 : vector<16x1xf32>
    %c0_18 = arith.constant 0 : index
    %c0_19 = arith.constant 0 : index
    %37 = vector.load %arg7[%c0_18, %c0_19] : memref<16x1xf32, #tpu.memory_space<vmem>>, vector<16x1xf32>
    tpu.vector_store %arg7[%c0_18, %c0_19], %36 {strides = array<i32>} : memref<16x1xf32, #tpu.memory_space<vmem>>, vector<16x1xf32>,
    %c0_i32_20 = arith.constant 0 : i32
    %38 = arith.cmpi eq, %arg1, %c0_i32_20 : i32
    %39 = arith.extui %38 : i1 to i32
    %c0_i32_21 = arith.constant 0 : i32
    %40 = arith.cmpi ne, %39, %c0_i32_21 : i32
    scf.if %40 {
      %c0_22 = arith.constant 0 : index
      %c0_23 = arith.constant 0 : index
      %41 = vector.load %arg6[%c0_22, %c0_23] : memref<16x1xf32, #tpu.memory_space<vmem>>, vector<16x1xf32>
      %42 = vector.shape_cast %41 : vector<16x1xf32> to vector<1x16x1xf32>
      %cst_24 = arith.constant dense<0.000000e+00> : vector<1xf32>
      %43 = vector.multi_reduction <add>, %42, %cst_24 [1, 2] : vector<1x16x1xf32> to vector<1xf32>
      %44 = vector.shape_cast %43 : vector<1xf32> to vector<1x1x1xf32>
      %45 = vector.extract %44[0, 0, 0] : f32 from vector<1x1x1xf32>
      %c0_25 = arith.constant 0 : index
      %c0_26 = arith.constant 0 : index
      %46 = memref.load %arg5[%c0_25, %c0_26] : memref<1x2xf32, #tpu.memory_space<smem>>
      memref.store %45, %arg5[%c0_25, %c0_26] : memref<1x2xf32, #tpu.memory_space<smem>>
      %c0_27 = arith.constant 0 : index
      %c0_28 = arith.constant 0 : index
      %47 = vector.load %arg7[%c0_27, %c0_28] : memref<16x1xf32, #tpu.memory_space<vmem>>, vector<16x1xf32>
      %48 = vector.shape_cast %47 : vector<16x1xf32> to vector<1x16x1xf32>
      %cst_29 = arith.constant dense<0.000000e+00> : vector<1xf32>
      %49 = vector.multi_reduction <add>, %48, %cst_29 [1, 2] : vector<1x16x1xf32> to vector<1xf32>
      %50 = vector.shape_cast %49 : vector<1xf32> to vector<1x1x1xf32>
      %51 = vector.extract %50[0, 0, 0] : f32 from vector<1x1x1xf32>
      %c0_30 = arith.constant 0 : index
      %c1 = arith.constant 1 : index
      %52 = memref.load %arg5[%c0_30, %c1] : memref<1x2xf32, #tpu.memory_space<smem>>
      memref.store %51, %arg5[%c0_30, %c1] : memref<1x2xf32, #tpu.memory_space<smem>>
    } else {
    }
    return
  }
  func.func @transform_0(%arg0: i32, %arg1: i32) -> (i32, i32) {
    %c1_i32 = arith.constant 1 : i32
    %0 = arith.muli %arg0, %c1_i32 : i32
    %1 = arith.addi %0, %arg1 : i32
    %c0_i32 = arith.constant 0 : i32
    %c0_i32_0 = arith.constant 0 : i32
    return %1, %c0_i32 : i32, i32
  }
  func.func @transform_1(%arg0: i32, %arg1: i32) -> (i32, i32) {
    %c1_i32 = arith.constant 1 : i32
    %0 = arith.muli %arg0, %c1_i32 : i32
    %1 = arith.addi %0, %arg1 : i32
    %c0_i32 = arith.constant 0 : i32
    %c0_i32_0 = arith.constant 0 : i32
    return %1, %c0_i32 : i32, i32
  }
  func.func @transform_2(%arg0: i32, %arg1: i32) -> (i32, i32) {
    %c1_i32 = arith.constant 1 : i32
    %0 = arith.muli %arg0, %c1_i32 : i32
    %1 = arith.addi %0, %arg1 : i32
    %c0_i32 = arith.constant 0 : i32
    %c0_i32_0 = arith.constant 0 : i32
    return %1, %c0_i32 : i32, i32
  }
  func.func @transform_3(%arg0: i32, %arg1: i32) -> (i32, i32) {
    %c0_i32 = arith.constant 0 : i32
    %c0_i32_0 = arith.constant 0 : i32
    return %arg0, %c0_i32 : i32, i32
  }
}

</mosaic_0001>

<llo_original>
// kernel: tpu_custom_call.1
$region0: #{tpu_custom_call.1}
  #allocation0 [shape = 'u32[]', space=smem, size = 0x4, offset = 0x4, fixed_abs, tag = 'smem constant byte address 0x4 - core index']
  #allocation1 [shape = 'u32[144,128]{1,0:T(1,128)}', space=vmem, size = 0x12000, scoped, tag = 'internal scratch']
  #allocation2 [shape = 'f32[16,1]{1,0:T(8,128)}', space=vmem, size = 0x2000, scoped, tag = 'scratch operand']
  #allocation3 [shape = 'f32[16,1]{1,0:T(8,128)}', space=vmem, size = 0x2000, scoped, tag = 'scratch operand']
  %s0 = inlined_call_operand.hbm [shape: f32[16,32], index: 0, kind: input, shape index: {}]
  %s1 = inlined_call_operand.hbm [shape: s32[16,1], index: 1, kind: input, shape index: {}]
  %s2 = inlined_call_operand.hbm [shape: f32[16,1], index: 2, kind: input, shape index: {}]
  %s3 = inlined_call_operand.hbm [shape: f32[1,2], index: 3, kind: output, shape index: {}]
  %s4 = sld [smem:[#allocation0]]
  $region42: #{tpu_custom_call.1} parent=0
    _
  %s6 = ssub.s32 1, %s4
  %s7 = scalar_select 0, %s6, %s4
  $region1: #{tpu_custom_call.1} parent=0
    #allocation4 [shape = 'u8[8192]{0}', space=vmem, size = 0x2000, scoped, tag = 'input window, operand 0, single buffered']
    #allocation5 [shape = 's32[1]{0}', space=sflag, size = 0x4, scoped, tag = 'scoped memory for tpu_custom_call.1']
    #allocation6 [shape = 's32[1]{0}', space=sflag, size = 0x4, scoped, tag = 'scoped memory for tpu_custom_call.1']
    #allocation7 [shape = 'u8[8192]{0}', space=vmem, size = 0x2000, scoped, tag = 'input window, operand 1, single buffered']
    #allocation8 [shape = 's32[1]{0}', space=sflag, size = 0x4, scoped, tag = 'scoped memory for tpu_custom_call.1']
    #allocation9 [shape = 'u8[8192]{0}', space=vmem, size = 0x2000, scoped, tag = 'input window, operand 2, single buffered']
    #allocation10 [shape = 'u8[512]{0}', space=smem, size = 0x200, scoped, tag = 'output window, operand 0, single buffered']
    %8 = vsyncpa [#allocation5], 0
    %9 = vsyncpa [#allocation8], 0
    %10 = vsyncpa [#allocation6], 0
    // Predicated region
    $region2: #{tpu_custom_call.1} parent=1 // pred_check
      _
    $region3: #{tpu_custom_call.1} parent=1 // pred_check_branch
      %12 = sbr.rel (0) target = $region5
    $region4: #{tpu_custom_call.1} parent=1 // pred_region
      %s13 = sadd.s32 0, 0
      %s14 = smul.u32 2, %s13
      %s16 = ssub.s32 256, 256
      %17 = vsyncadd [#allocation5], %s16
      %s18 = smul.addr %s14, 128
      %s19 = scalar_lea.hbm %s0, %s18
      %s20 = sshll.u32 [#allocation4], 4
      %s21 = int_to_ptr.vmem [resolvable:$true] %s20
      %26 = dma.hbm_to_vmem [thread:$0]  %s19, 256, %s21, [#allocation5], 128, 128, 8
    $region5: #{tpu_custom_call.1} parent=1 // pred_fallthru
      _
    // Predicated region
    $region6: #{tpu_custom_call.1} parent=1 // pred_check
      _
    $region7: #{tpu_custom_call.1} parent=1 // pred_check_branch
      %28 = sbr.rel (0) target = $region9
    $region8: #{tpu_custom_call.1} parent=1 // pred_region
      %s29 = sadd.s32 0, 0
      %s30 = smul.u32 2, %s29
      %s32 = ssub.s32 256, 256
      %33 = vsyncadd [#allocation8], %s32
      %s34 = smul.addr %s30, 128
      %s35 = scalar_lea.hbm %s1, %s34
      %s36 = sshll.u32 [#allocation7], 4
      %s37 = int_to_ptr.vmem [resolvable:$true] %s36
      %42 = dma.hbm_to_vmem [thread:$0]  %s35, 256, %s37, [#allocation8], 128, 128, 8
    $region9: #{tpu_custom_call.1} parent=1 // pred_fallthru
      _
    // Predicated region
    $region10: #{tpu_custom_call.1} parent=1 // pred_check
      _
    $region11: #{tpu_custom_call.1} parent=1 // pred_check_branch
      %44 = sbr.rel (0) target = $region13
    $region12: #{tpu_custom_call.1} parent=1 // pred_region
      %s45 = sadd.s32 0, 0
      %s46 = smul.u32 2, %s45
      %s48 = ssub.s32 256, 256
      %49 = vsyncadd [#allocation8], %s48
      %s50 = smul.addr %s46, 128
      %s51 = scalar_lea.hbm %s2, %s50
      %s52 = sshll.u32 [#allocation9], 4
      %s53 = int_to_ptr.vmem [resolvable:$true] %s52
      %58 = dma.hbm_to_vmem [thread:$0]  %s51, 256, %s53, [#allocation8], 128, 128, 8
    $region13: #{tpu_custom_call.1} parent=1 // pred_fallthru
      _
    // Predicated region
    $region14: #{tpu_custom_call.1} parent=1 // pred_check
      _
    $region15: #{tpu_custom_call.1} parent=1 // pred_check_branch
      %60 = sbr.rel (0) target = $region17
    $region16: #{tpu_custom_call.1} parent=1 // pred_region
      %61 = dma.done [#allocation5], 256
    $region17: #{tpu_custom_call.1} parent=1 // pred_fallthru
      _
    // Predicated region
    $region18: #{tpu_custom_call.1} parent=1 // pred_check
      _
    $region19: #{tpu_custom_call.1} parent=1 // pred_check_branch
      %63 = sbr.rel (0) target = $region21
    $region20: #{tpu_custom_call.1} parent=1 // pred_region
      %64 = dma.done [#allocation8], 256
    $region21: #{tpu_custom_call.1} parent=1 // pred_fallthru
      _
    // Predicated region
    $region22: #{tpu_custom_call.1} parent=1 // pred_check
      _
    $region23: #{tpu_custom_call.1} parent=1 // pred_check_branch
      %66 = sbr.rel (0) target = $region25
    $region24: #{tpu_custom_call.1} parent=1 // pred_region
      %67 = dma.done [#allocation8], 256
    $region25: #{tpu_custom_call.1} parent=1 // pred_fallthru
      _
    %s68 = sadd.s32 0, 0
    %s69 = smul.u32 2, %s68
    %s70 = sadd.s32 0, 0
    %s71 = smul.u32 2, %s70
    %s72 = sadd.s32 0, 0
    %s73 = smul.u32 2, %s72
    %p74 = scmp.eq.s32.totalorder 0, 0
    // Predicated region
    $region26: #{tpu_custom_call.1} parent=1 // pred_check
      %p75 = pneg %p74
    $region27: #{tpu_custom_call.1} parent=1 // pred_check_branch
      %77 = sbr.rel (%p75) target = $region29
    $region28: #{tpu_custom_call.1} parent=1 // pred_region
      %vm78 = vcmask 7168
      %79 = vst.msk [vmem:[#allocation2] sm:$0xff] %vm78, 0.0
      %80 = vst.msk [vmem:[#allocation2 + $0x8] sm:$0xff] %vm78, 0.0
      %81 = vst.msk [vmem:[#allocation3] sm:$0xff] %vm78, 0.0
      %82 = vst.msk [vmem:[#allocation3 + $0x8] sm:$0xff] %vm78, 0.0
    $region29: #{tpu_custom_call.1} parent=1 // pred_fallthru
      _
    %v83 = vld [vmem:[#allocation4] sm:$0xff]
    %v84 = vld [vmem:[#allocation4 + $0x8] sm:$0xff]
    %vm85 = vcmask 261120
    %v86 = vsel %vm85, %v83, -inf
    %87 = vmax.xlane.f32.xlu0 %v86
    %v88 = vpop.xlane.xlu0 %87
    %v89 = vsel %vm85, %v84, -inf
    %90 = vmax.xlane.f32.xlu0 %v89
    %v91 = vpop.xlane.xlu0 %90
    %v92 = vsub.f32 %v83, %v88
    %v93 = vsub.f32 %v84, %v91
    %v94 = vmul.f32 %v92, 1.442695
    %v95 = vpow.pop %v94
    %v96 = vmul.f32 %v93, 1.442695
    %v97 = vpow.pop %v96
    %v98 = vsel %vm85, %v95, 0.0
    %99 = vadd.xlane.f32.xlu0 %v98
    %v100 = vpop.xlane.xlu0 %99
    %v101 = vsel %vm85, %v97, 0.0
    %102 = vadd.xlane.f32.xlu0 %v101
    %v103 = vpop.xlane.xlu0 %102
    %v104 = vld [vmem:[#allocation7] sm:$0xff]
    %v105 = vld [vmem:[#allocation7 + $0x8] sm:$0xff]
    %vm106 = vcmp.gt.s32.totalorder %v104, 0
    %v107 = vsel %vm106, %v104, 0
    %vm108 = vcmp.gt.s32.totalorder %v105, 0
    %v109 = vsel %vm108, %v105, 0
    %vm110 = vcmp.lt.s32.totalorder %v107, 31
    %v111 = vsel %vm110, %v107, 31
    %vm112 = vcmp.lt.s32.totalorder %v109, 31
    %v113 = vsel %vm112, %v109, 31
    %v114 = vlaneseq
    %v115 = vand.u32 %v114, 127
    %116 = vset.pattern.permute.xlu0 0
    %117 = vperm.xlu0 %116, %v111
    %v118 = vpop.permute.xlu0 %117
    %119 = vset.pattern.permute.xlu0 0
    %120 = vperm.xlu0 %119, %v113
    %v121 = vpop.permute.xlu0 %120
    %vm122 = vcmp.eq.s32.totalorder %v115, %v118
    %vm123 = vcmp.eq.s32.totalorder %v115, %v121
    %v124 = vsel %vm122, %v83, 0.0
    %v125 = vsel %vm123, %v84, 0.0
    %v126 = vsel %vm85, %v124, 0.0
    %127 = vadd.xlane.f32.xlu0 %v126
    %v128 = vpop.xlane.xlu0 %127
    %v129 = vsel %vm85, %v125, 0.0
    %130 = vadd.xlane.f32.xlu0 %v129
    %v131 = vpop.xlane.xlu0 %130
    %v132 = vsub.f32 %v128, %v88
    %v133 = vsub.f32 %v131, %v91
    %v134 = vlog2.pop %v100
    %v135 = vmul.f32 %v134, 0.6931472
    %v136 = vlog2.pop %v103
    %v137 = vmul.f32 %v136, 0.6931472
    %v138 = vsub.f32 %v132, %v135
    %v139 = vsub.f32 %v133, %v137
    %v140 = vmax.f32 %v138, -55.262043
    %v141 = vmax.f32 %v139, -55.262043
    %v142 = vsub.f32 0.0, %v140
    %v143 = vsub.f32 0.0, %v141
    %v144 = vld [vmem:[#allocation9] sm:$0xff]
    %v145 = vld [vmem:[#allocation9 + $0x8] sm:$0xff]
    %v146 = vld [vmem:[#allocation2] sm:$0xff]
    %v147 = vld [vmem:[#allocation2 + $0x8] sm:$0xff]
    %v148 = vmul.f32 %v142, %v144
    %v149 = vmul.f32 %v143, %v145
    %v150 = vadd.f32 %v146, %v148
    %v151 = vadd.f32 %v147, %v149
    %vm152 = vcmask 7168
    %153 = vst.msk [vmem:[#allocation2] sm:$0xff] %vm152, %v150
    %154 = vst.msk [vmem:[#allocation2 + $0x8] sm:$0xff] %vm152, %v151
    %v155 = vld [vmem:[#allocation3] sm:$0xff]
    %v156 = vld [vmem:[#allocation3 + $0x8] sm:$0xff]
    %v157 = vadd.f32 %v155, %v144
    %v158 = vadd.f32 %v156, %v145
    %159 = vst.msk [vmem:[#allocation3] sm:$0xff] %vm152, %v157
    %160 = vst.msk [vmem:[#allocation3 + $0x8] sm:$0xff] %vm152, %v158
    // Predicated region
    $region30: #{tpu_custom_call.1} parent=1 // pred_check
      %p161 = pneg %p74
    $region31: #{tpu_custom_call.1} parent=1 // pred_check_branch
      %163 = sbr.rel (%p161) target = $region33
    $region32: #{tpu_custom_call.1} parent=1 // pred_region
      %v164 = vld [vmem:[#allocation2] sm:$0xff]
      %v165 = vld [vmem:[#allocation2 + $0x8] sm:$0xff]
      %v166 = vsel %vm152, %v164, 0.0
      %v167 = vsel %vm152, %v165, 0.0
      %v168 = vadd.f32 %v166, %v167
      %169 = vadd.xlane.f32.xlu0 %v168
      %v170 = vpop.xlane.xlu0 %169
      %v171 = vrot.slane %v170, 4
      %v172 = vadd.f32 %v170, %v171
      %v173 = vrot.slane %v172, 2
      %v174 = vadd.f32 %v172, %v173
      %v175 = vrot.slane %v174, 1
      %v176 = vadd.f32 %v174, %v175
      %s177 = vtos %v176
      %s178 = scalar_lea.smem [#allocation10], 0
      %179 = sst [smem:[%s178]] %s177
      %v180 = vld [vmem:[#allocation3] sm:$0xff]
      %v181 = vld [vmem:[#allocation3 + $0x8] sm:$0xff]
      %v182 = vsel %vm152, %v180, 0.0
      %v183 = vsel %vm152, %v181, 0.0
      %v184 = vadd.f32 %v182, %v183
      %185 = vadd.xlane.f32.xlu0 %v184
      %v186 = vpop.xlane.xlu0 %185
      %v187 = vrot.slane %v186, 4
      %v188 = vadd.f32 %v186, %v187
      %v189 = vrot.slane %v188, 2
      %v190 = vadd.f32 %v188, %v189
      %v191 = vrot.slane %v190, 1
      %v192 = vadd.f32 %v190, %v191
      %s193 = vtos %v192
      %s194 = scalar_lea.smem [#allocation10], 1
      %195 = sst [smem:[%s194]] %s193
    $region33: #{tpu_custom_call.1} parent=1 // pred_fallthru
      _
    // Predicated region
    $region34: #{tpu_custom_call.1} parent=1 // pred_check
      _
    $region35: #{tpu_custom_call.1} parent=1 // pred_check_branch
      %197 = sbr.rel (0) target = $region37
    $region36: #{tpu_custom_call.1} parent=1 // pred_region
      %s199 = ssub.s32 16, 16
      %200 = vsyncadd [#allocation6], %s199
      %203 = dma.smem_to_hbm [#allocation10], 16, %s3, [#allocation6]
    $region37: #{tpu_custom_call.1} parent=1 // pred_fallthru
      _
    // Predicated region
    $region38: #{tpu_custom_call.1} parent=1 // pred_check
      _
    $region39: #{tpu_custom_call.1} parent=1 // pred_check_branch
      %205 = sbr.rel (0) target = $region41
    $region40: #{tpu_custom_call.1} parent=1 // pred_region
      %206 = dma.done [#allocation6], 16
    $region41: #{tpu_custom_call.1} parent=1 // pred_fallthru
      _
    %207 = sfence
    %208 = vsyncpa [#allocation5], 1
    %209 = vsyncpa [#allocation8], 1
    %210 = vsyncpa [#allocation6], 1

</llo_original>
